<compile_context>
chip_gen: v6e
topology: v6e:2x2x1
jax: 0.10.0
libtpu: 0.0.40
codegen_flags: <defaults>
</compile_context>

<pallas_src>
import functools
import math

import jax
import jax.numpy as jnp
from jax.experimental import pallas as pl
from jax.experimental.pallas import tpu as pltpu

EPS = 1e-7
_MAX_TILE_ROWS = 16384          # bounds unrolled code size (~2k vregs / body)


@functools.lru_cache(maxsize=None)
def _tpu_defaults():
    """(per-core VMEM capacity in bytes, default number of grid partials)."""
    vmem_cap = 64 << 20                      # conservative: v7x per-TC VMEM
    partials = 1
    try:
        vmem_cap = int(pltpu.get_tpu_info().vmem_capacity_bytes)
    except Exception:
        pass
    try:
        kind = jax.devices()[0].device_kind.lower()
        if "v7" in kind or "tpu7" in kind:
            partials = 2                     # two TensorCores share HBM on v7x
            vmem_cap = min(vmem_cap, 64 << 20)
    except Exception:
        pass
    return max(vmem_cap, 32 << 20), partials


def _choose_tb(rows, cols, bytes_per_elem, requested, vmem_cap):
    """Row tile: as big as the VMEM budget allows (HBM-bandwidth-bound kernel,
    so large tiles amortize the ~0.35 us/step overhead), 32-row aligned so
    int8/bool blocks respect their (32, 128) packing."""
    if requested is None:
        # Per-step tile bytes (predicted + mask, one buffer); double-buffered
        # inputs plus accumulator and headroom must fit the per-core VMEM.
        budget = min(8 << 20, max(2 << 20, (vmem_cap - (16 << 20)) // 5))
        requested = budget // max(1, cols * bytes_per_elem)
    requested = int(min(requested, _MAX_TILE_ROWS, rows))
    if rows < 32:
        return rows                          # single full-array block: legal
    return max(32, (requested // 32) * 32)


def _negloglik_kernel(p_ref, m_ref, out_ref, *, tb, cols, steps, n_full,
                      ragged_rows, gated):
    """p_ref: (tb, cols) predictions (native dtype), m_ref: (tb, cols) mask
    (bool or integer), out_ref: (8, cols) f32 per-partial accumulator that
    stays VMEM-resident across the reduction axis j."""
    part = pl.program_id(0)
    j = pl.program_id(1)

    @pl.when(j == 0)
    def _init():
        out_ref[...] = jnp.zeros_like(out_ref)

    def accumulate(nrows):
        """Accumulate rows [0, nrows) of this block; `nrows` is a static int."""
        r8 = min(tb, ((nrows + 31) // 32) * 32)       # 32-aligned static slice
        p = p_ref[:r8, :].astype(jnp.float32)         # in-kernel upcast (VPU)
        m = m_ref[:r8, :]
        if m.dtype != jnp.bool_:
            m = m != 0
        if nrows != r8:
            row = jax.lax.broadcasted_iota(jnp.int32, (r8, cols), 0)
            m = jnp.logical_and(m, row < nrows)
        # select (not multiply): log() of padded / unmasked garbage never
        # propagates into the accumulator.
        contrib = jnp.where(m, jnp.log(p + EPS), 0.0)
        # (r8, cols) -> (r8//8, 8, cols) is a pure sublane-group split; the
        # axis-0 sum is one VPU add per input vreg into the vreg-aligned slab.
        out_ref[...] += contrib.reshape(r8 // 8, 8, cols).sum(axis=0)

    if tb % 8 != 0:
        # Only reachable when tb == rows < 32 (single full-array block).
        p = p_ref[...].astype(jnp.float32)
        m = m_ref[...]
        if m.dtype != jnp.bool_:
            m = m != 0
        contrib = jnp.where(m, jnp.log(p + EPS), 0.0)
        red = jnp.sum(contrib, axis=0, keepdims=True)            # (1, cols)
        sub = jax.lax.broadcasted_iota(jnp.int32, (8, cols), 0)
        # Bit-exact: put the row-sum on sublane 0, zeros elsewhere.
        out_ref[...] = jnp.where(sub == 0, jnp.broadcast_to(red, (8, cols)), 0.0)
    elif not gated:
        accumulate(tb)
    else:
        tile = part * steps + j

        @pl.when(tile < n_full)
        def _full():                       # full tiles: no masking overhead
            accumulate(tb)

        if ragged_rows:
            @pl.when(tile == n_full)
            def _ragged():                 # the one ragged tile: small slice
                accumulate(ragged_rows)
        # tiles >= n_tiles (clamped over-coverage): skip compute entirely.


def _negloglik_sum_2d(pred2, mask2, *, tb=None, num_partials=None):
    """Sum of -log(pred2 + EPS) over elements where mask2 is set (f32 scalar)."""
    rows, cols = pred2.shape
    p_item = jnp.dtype(pred2.dtype).itemsize
    m_item = jnp.dtype(mask2.dtype).itemsize
    vmem_cap, default_partials = _tpu_defaults()
    if num_partials is None:
        num_partials = default_partials

    tb = _choose_tb(rows, cols, p_item + m_item, tb, vmem_cap)
    n_tiles = int(pl.cdiv(rows, tb))
    num_partials = max(1, min(int(num_partials), n_tiles))
    steps = int(pl.cdiv(n_tiles, num_partials))
    coverage = num_partials * steps               # tiles the grid will visit
    ragged_rows = rows % tb                       # valid rows in the last tile
    n_full = n_tiles - (1 if ragged_rows else 0)
    gated = bool(ragged_rows) or coverage != n_tiles
    last_tile = n_tiles - 1

    if coverage != n_tiles:
        def in_index(part, j):
            # Clamp fully out-of-range tiles onto the last real tile; their
            # compute is skipped in-kernel, so they only cost a redundant fetch.
            return (jnp.minimum(part * steps + j, last_tile), 0)
    else:
        def in_index(part, j):
            return (part * steps + j, 0)

    kernel = functools.partial(
        _negloglik_kernel, tb=tb, cols=cols, steps=steps, n_full=n_full,
        ragged_rows=ragged_rows, gated=gated)

    block_bytes = tb * cols * (p_item + m_item)
    vmem_limit = int(min(max(3 * block_bytes + (8 << 20), 32 << 20),
                         vmem_cap - (4 << 20)))

    n_elem = rows * cols
    cost = pl.CostEstimate(
        flops=2 * n_elem,
        transcendentals=n_elem,
        bytes_accessed=(p_item + m_item) * n_elem + 4 * 8 * num_partials * cols)

    partials = pl.pallas_call(
        kernel,
        out_shape=jax.ShapeDtypeStruct((8 * num_partials, cols), jnp.float32),
        grid=(num_partials, steps),
        in_specs=[
            pl.BlockSpec((tb, cols), in_index),
            pl.BlockSpec((tb, cols), in_index),
        ],
        # One (8, cols) vreg-aligned accumulator slab per partial; constant
        # across the reduction axis j -> stays resident in VMEM.
        out_specs=pl.BlockSpec((8, cols), lambda part, j: (part, 0)),
        compiler_params=pltpu.CompilerParams(
            dimension_semantics=("parallel", "arbitrary"),
            vmem_limit_bytes=vmem_limit),
        cost_estimate=cost,
    )(pred2, mask2)

    # Tiny final reduction (8*num_partials x cols, f32); the single negate here
    # replaces a per-element negate inside the kernel.
    return -jnp.sum(partials, dtype=jnp.float32)


@functools.lru_cache(maxsize=None)
def _bool_mask_supported():
    """Probe (once) whether this Pallas/Mosaic build accepts bool mask refs,
    so the mask streams over HBM without a materialized int8 copy."""
    try:
        p = jnp.full((64, 256), 0.5, jnp.float32)
        m = jnp.ones((64, 256), jnp.bool_)
        got = float(jax.block_until_ready(
            _negloglik_sum_2d(p, m, tb=32, num_partials=1)))
        expected = -(64 * 256) * math.log(0.5 + EPS)
        return abs(got - expected) < 1e-3 * abs(expected)
    except Exception:
        return False


def negloglik(predicted, observed, *, tb=None, num_partials=None):
    """predicted: float array, observed: same-shape bool (or integer) mask.

    Returns sum(-log(predicted[observed] + 1e-7)) / observed.shape[0],
    matching the PyTorch NegLogLik forward pass.
    """
    assert predicted.shape == observed.shape
    batch_size = observed.shape[0]

    mask = observed
    if mask.dtype == jnp.bool_ and not _bool_mask_supported():
        # Fallback only: costs one extra HBM pass over the mask.
        mask = mask.astype(jnp.int8)

    # Lane-dense layout: view the data as (N//128, 128) whenever possible (a
    # free bitcast for contiguous row-major data) so every vreg / EUP log /
    # store is fully utilized regardless of the trailing dim.
    n_elem = predicted.size
    if n_elem % 128 == 0:
        rows, cols = n_elem // 128, 128
    else:
        cols = predicted.shape[-1]
        rows = n_elem // cols
    pred2 = predicted.reshape(rows, cols)
    mask2 = mask.reshape(rows, cols)

    total = _negloglik_sum_2d(pred2, mask2, tb=tb, num_partials=num_partials)
    # TODO(synk): training would need a custom_vjp (d/dp = -mask/(p+eps)/B);
    # only the forward pass of the PyTorch module is implemented here.
    return total / batch_size


def negloglik_ref(predicted, observed):
    """Plain-JAX reference mirroring the PyTorch forward."""
    sel = jnp.where(observed, -jnp.log(predicted.astype(jnp.float32) + EPS), 0.0)
    return jnp.sum(sel) / observed.shape[0]


if __name__ == "__main__":
    key = jax.random.PRNGKey(0)
    case = [0]

    def run_case(B, C, dtype=jnp.float32, **kw):
        case[0] += 1
        kp, km = jax.random.split(jax.random.fold_in(key, case[0]))
        predicted = jax.random.uniform(
            kp, (B, C), dtype=jnp.float32, minval=0.01, maxval=1.0).astype(dtype)
        observed = jax.random.bernoulli(km, 0.5, (B, C))
        out = jax.block_until_ready(negloglik(predicted, observed, **kw))
        ref = jax.block_until_ready(negloglik_ref(predicted, observed))
        assert jnp.allclose(out, ref, rtol=1e-4, atol=1e-4), (
            B, C, float(out), float(ref))

    # Auto-sized tile / partials (ragged last tile: 200 % 192 = 8 rows).
    run_case(200, 128)
    # Small explicit tile + 3 partials: ragged AND clamped (out-of-range) tiles.
    run_case(200, 128, tb=64, num_partials=3)
    # Last dim not a multiple of 128 -> lane-dense (N//128, 128) flattened path.
    run_case(96, 64)
    # Tiny batch, odd width: single full-array block, tb % 8 != 0 fallback.
    run_case(5, 33)
    # bf16 predictions: upcast to f32 on the VPU inside the kernel.
    run_case(64, 256, dtype=jnp.bfloat16)

    print("KERNEL_OK")
</pallas_src>

<mosaic_0001>
module attributes {stable_mosaic.version = 11 : i64} {
  func.func @_negloglik_kernel(%arg0: i32, %arg1: i32, %arg2: memref<32x256xf32, #tpu.memory_space<vmem>>, %arg3: memref<32x256xi32, #tpu.memory_space<vmem>>, %arg4: memref<8x256xf32, #tpu.memory_space<vmem>>) attributes {dimension_semantics = [#tpu.dimension_semantics<parallel>, #tpu.dimension_semantics<arbitrary>], iteration_bounds = array<i64: 1, 2>, scalar_prefetch = 0 : i64, scratch_operands = 0 : i64, tpu.core_type = #tpu.core_type<tc>, window_params = [{transform_indices = @transform_0, window_bounds = array<i64: 32, 256>}, {transform_indices = @transform_1, window_bounds = array<i64: 32, 256>}, {transform_indices = @transform_2, window_bounds = array<i64: 8, 256>}]} {
    %c0_i32 = arith.constant 0 : i32
    %0 = arith.cmpi eq, %arg1, %c0_i32 : i32
    %1 = arith.extui %0 : i1 to i32
    %c0_i32_0 = arith.constant 0 : i32
    %2 = arith.cmpi ne, %1, %c0_i32_0 : i32
    scf.if %2 {
      %cst_11 = arith.constant 0.000000e+00 : f32
      %16 = vector.broadcast %cst_11 : f32 to vector<8x256xf32>
      %c0_12 = arith.constant 0 : index
      %c0_13 = arith.constant 0 : index
      %17 = vector.load %arg4[%c0_12, %c0_13] : memref<8x256xf32, #tpu.memory_space<vmem>>, vector<8x256xf32>
      tpu.vector_store %arg4[%c0_12, %c0_13], %16 {strides = array<i32>} : memref<8x256xf32, #tpu.memory_space<vmem>>, vector<8x256xf32>,
    } else {
    }
    %c0 = arith.constant 0 : index
    %c0_1 = arith.constant 0 : index
    %3 = vector.load %arg2[%c0, %c0_1] : memref<32x256xf32, #tpu.memory_space<vmem>>, vector<32x256xf32>
    %c0_2 = arith.constant 0 : index
    %c0_3 = arith.constant 0 : index
    %4 = vector.load %arg3[%c0_2, %c0_3] : memref<32x256xi32, #tpu.memory_space<vmem>>, vector<32x256xi32>
    %cst = arith.constant dense<0> : vector<32x256xi32>
    %5 = arith.cmpi ne, %4, %cst : vector<32x256xi32>
    %cst_4 = arith.constant 1.000000e-07 : f32
    %6 = vector.broadcast %cst_4 : f32 to vector<32x256xf32>
    %7 = arith.addf %3, %6 : vector<32x256xf32>
    %8 = math.log %7 : vector<32x256xf32>
    %cst_5 = arith.constant 0.000000e+00 : f32
    %9 = vector.broadcast %cst_5 : f32 to vector<32x256xf32>
    %10 = arith.select %5, %8, %9 : vector<32x256xi1>, vector<32x256xf32>
    %c0_6 = arith.constant 0 : index
    %c0_7 = arith.constant 0 : index
    %11 = vector.load %arg4[%c0_6, %c0_7] : memref<8x256xf32, #tpu.memory_space<vmem>>, vector<8x256xf32>
    %12 = vector.shape_cast %10 : vector<32x256xf32> to vector<4x8x256xf32>
    %cst_8 = arith.constant dense<0.000000e+00> : vector<8x256xf32>
    %13 = vector.multi_reduction <add>, %12, %cst_8 [0] : vector<4x8x256xf32> to vector<8x256xf32>
    %14 = arith.addf %11, %13 : vector<8x256xf32>
    %c0_9 = arith.constant 0 : index
    %c0_10 = arith.constant 0 : index
    %15 = vector.load %arg4[%c0_9, %c0_10] : memref<8x256xf32, #tpu.memory_space<vmem>>, vector<8x256xf32>
    tpu.vector_store %arg4[%c0_9, %c0_10], %14 {strides = array<i32>} : memref<8x256xf32, #tpu.memory_space<vmem>>, vector<8x256xf32>,
    return
  }
  func.func @transform_0(%arg0: i32, %arg1: i32) -> (i32, i32) {
    %c2_i32 = arith.constant 2 : i32
    %0 = arith.muli %arg0, %c2_i32 : i32
    %1 = arith.addi %0, %arg1 : i32
    %c0_i32 = arith.constant 0 : i32
    %c0_i32_0 = arith.constant 0 : i32
    return %1, %c0_i32 : i32, i32
  }
  func.func @transform_1(%arg0: i32, %arg1: i32) -> (i32, i32) {
    %c2_i32 = arith.constant 2 : i32
    %0 = arith.muli %arg0, %c2_i32 : i32
    %1 = arith.addi %0, %arg1 : i32
    %c0_i32 = arith.constant 0 : i32
    %c0_i32_0 = arith.constant 0 : i32
    return %1, %c0_i32 : i32, i32
  }
  func.func @transform_2(%arg0: i32, %arg1: i32) -> (i32, i32) {
    %c0_i32 = arith.constant 0 : i32
    %c0_i32_0 = arith.constant 0 : i32
    return %arg0, %c0_i32 : i32, i32
  }
}

module attributes {stable_mosaic.version = 11 : i64} {
  func.func @_negloglik_kernel(%arg0: i32, %arg1: i32, %arg2: memref<192x128xf32, #tpu.memory_space<vmem>>, %arg3: memref<192x128xi8, #tpu.memory_space<vmem>>, %arg4: memref<8x128xf32, #tpu.memory_space<vmem>>) attributes {dimension_semantics = [#tpu.dimension_semantics<parallel>, #tpu.dimension_semantics<arbitrary>], iteration_bounds = array<i64: 1, 2>, scalar_prefetch = 0 : i64, scratch_operands = 0 : i64, tpu.core_type = #tpu.core_type<tc>, window_params = [{transform_indices = @transform_0, window_bounds = array<i64: 192, 128>}, {transform_indices = @transform_1, window_bounds = array<i64: 192, 128>}, {transform_indices = @transform_2, window_bounds = array<i64: 8, 128>}]} {
    %c0_i32 = arith.constant 0 : i32
    %0 = arith.cmpi eq, %arg1, %c0_i32 : i32
    %1 = arith.extui %0 : i1 to i32
    %c0_i32_0 = arith.constant 0 : i32
    %2 = arith.cmpi ne, %1, %c0_i32_0 : i32
    scf.if %2 {
      %cst = arith.constant 0.000000e+00 : f32
      %11 = vector.broadcast %cst : f32 to vector<8x128xf32>
      %c0 = arith.constant 0 : index
      %c0_4 = arith.constant 0 : index
      %12 = vector.load %arg4[%c0, %c0_4] : memref<8x128xf32, #tpu.memory_space<vmem>>, vector<8x128xf32>
      tpu.vector_store %arg4[%c0, %c0_4], %11 {strides = array<i32>} : memref<8x128xf32, #tpu.memory_space<vmem>>, vector<8x128xf32>,
    } else {
    }
    %c2_i32 = arith.constant 2 : i32
    %3 = arith.muli %arg0, %c2_i32 : i32
    %4 = arith.addi %3, %arg1 : i32
    %c1_i32 = arith.constant 1 : i32
    %5 = arith.cmpi slt, %4, %c1_i32 : i32
    %6 = arith.extui %5 : i1 to i32
    %c0_i32_1 = arith.constant 0 : i32
    %7 = arith.cmpi ne, %6, %c0_i32_1 : i32
    scf.if %7 {
      %c0 = arith.constant 0 : index
      %c0_4 = arith.constant 0 : index
      %11 = vector.load %arg2[%c0, %c0_4] : memref<192x128xf32, #tpu.memory_space<vmem>>, vector<192x128xf32>
      %c0_5 = arith.constant 0 : index
      %c0_6 = arith.constant 0 : index
      %12 = vector.load %arg3[%c0_5, %c0_6] : memref<192x128xi8, #tpu.memory_space<vmem>>, vector<192x128xi8>
      %c0_i8 = arith.constant 0 : i8
      %13 = vector.broadcast %c0_i8 : i8 to vector<192x128xi8>
      %14 = arith.cmpi ne, %12, %13 : vector<192x128xi8>
      %cst = arith.constant 1.000000e-07 : f32
      %15 = vector.broadcast %cst : f32 to vector<192x128xf32>
      %16 = arith.addf %11, %15 : vector<192x128xf32>
      %17 = math.log %16 : vector<192x128xf32>
      %cst_7 = arith.constant 0.000000e+00 : f32
      %18 = vector.broadcast %cst_7 : f32 to vector<192x128xf32>
      %19 = arith.select %14, %17, %18 : vector<192x128xi1>, vector<192x128xf32>
      %c0_8 = arith.constant 0 : index
      %c0_9 = arith.constant 0 : index
      %20 = vector.load %arg4[%c0_8, %c0_9] : memref<8x128xf32, #tpu.memory_space<vmem>>, vector<8x128xf32>
      %21 = vector.shape_cast %19 : vector<192x128xf32> to vector<24x8x128xf32>
      %cst_10 = arith.constant dense<0.000000e+00> : vector<8x128xf32>
      %22 = vector.multi_reduction <add>, %21, %cst_10 [0] : vector<24x8x128xf32> to vector<8x128xf32>
      %23 = arith.addf %20, %22 : vector<8x128xf32>
      %c0_11 = arith.constant 0 : index
      %c0_12 = arith.constant 0 : index
      %24 = vector.load %arg4[%c0_11, %c0_12] : memref<8x128xf32, #tpu.memory_space<vmem>>, vector<8x128xf32>
      tpu.vector_store %arg4[%c0_11, %c0_12], %23 {strides = array<i32>} : memref<8x128xf32, #tpu.memory_space<vmem>>, vector<8x128xf32>,
    } else {
    }
    %c1_i32_2 = arith.constant 1 : i32
    %8 = arith.cmpi eq, %4, %c1_i32_2 : i32
    %9 = arith.extui %8 : i1 to i32
    %c0_i32_3 = arith.constant 0 : i32
    %10 = arith.cmpi ne, %9, %c0_i32_3 : i32
    scf.if %10 {
      %c0 = arith.constant 0 : index
      %c0_4 = arith.constant 0 : index
      %11 = vector.load %arg2[%c0, %c0_4] : memref<192x128xf32, #tpu.memory_space<vmem>>, vector<32x128xf32>
      %c0_5 = arith.constant 0 : index
      %c0_6 = arith.constant 0 : index
      %12 = vector.load %arg3[%c0_5, %c0_6] : memref<192x128xi8, #tpu.memory_space<vmem>>, vector<32x128xi8>
      %c0_i8 = arith.constant 0 : i8
      %13 = vector.broadcast %c0_i8 : i8 to vector<32x128xi8>
      %14 = arith.cmpi ne, %12, %13 : vector<32x128xi8>
      %15 = tpu.iota {dimensions = array<i32: 0>} : vector<32x128xi32>
      %c8_i32 = arith.constant 8 : i32
      %16 = vector.broadcast %c8_i32 : i32 to vector<32x128xi32>
      %17 = arith.cmpi slt, %15, %16 : vector<32x128xi32>
      %18 = arith.andi %14, %17 : vector<32x128xi1>
      %cst = arith.constant 1.000000e-07 : f32
      %19 = vector.broadcast %cst : f32 to vector<32x128xf32>
      %20 = arith.addf %11, %19 : vector<32x128xf32>
      %21 = math.log %20 : vector<32x128xf32>
      %cst_7 = arith.constant 0.000000e+00 : f32
      %22 = vector.broadcast %cst_7 : f32 to vector<32x128xf32>
      %23 = arith.select %18, %21, %22 : vector<32x128xi1>, vector<32x128xf32>
      %c0_8 = arith.constant 0 : index
      %c0_9 = arith.constant 0 : index
      %24 = vector.load %arg4[%c0_8, %c0_9] : memref<8x128xf32, #tpu.memory_space<vmem>>, vector<8x128xf32>
      %25 = vector.shape_cast %23 : vector<32x128xf32> to vector<4x8x128xf32>
      %cst_10 = arith.constant dense<0.000000e+00> : vector<8x128xf32>
      %26 = vector.multi_reduction <add>, %25, %cst_10 [0] : vector<4x8x128xf32> to vector<8x128xf32>
      %27 = arith.addf %24, %26 : vector<8x128xf32>
      %c0_11 = arith.constant 0 : index
      %c0_12 = arith.constant 0 : index
      %28 = vector.load %arg4[%c0_11, %c0_12] : memref<8x128xf32, #tpu.memory_space<vmem>>, vector<8x128xf32>
      tpu.vector_store %arg4[%c0_11, %c0_12], %27 {strides = array<i32>} : memref<8x128xf32, #tpu.memory_space<vmem>>, vector<8x128xf32>,
    } else {
    }
    return
  }
  func.func @transform_0(%arg0: i32, %arg1: i32) -> (i32, i32) {
    %c2_i32 = arith.constant 2 : i32
    %0 = arith.muli %arg0, %c2_i32 : i32
    %1 = arith.addi %0, %arg1 : i32
    %c0_i32 = arith.constant 0 : i32
    %c0_i32_0 = arith.constant 0 : i32
    return %1, %c0_i32 : i32, i32
  }
  func.func @transform_1(%arg0: i32, %arg1: i32) -> (i32, i32) {
    %c2_i32 = arith.constant 2 : i32
    %0 = arith.muli %arg0, %c2_i32 : i32
    %1 = arith.addi %0, %arg1 : i32
    %c0_i32 = arith.constant 0 : i32
    %c0_i32_0 = arith.constant 0 : i32
    return %1, %c0_i32 : i32, i32
  }
  func.func @transform_2(%arg0: i32, %arg1: i32) -> (i32, i32) {
    %c0_i32 = arith.constant 0 : i32
    %c0_i32_0 = arith.constant 0 : i32
    return %arg0, %c0_i32 : i32, i32
  }
}

</mosaic_0001>

<llo_original>
// kernel: tpu_custom_call.1
$region0: #{tpu_custom_call.1}
  #allocation0 [shape = 'u32[]', space=smem, size = 0x4, offset = 0x4, fixed_abs, tag = 'smem constant byte address 0x4 - core index']
  #allocation1 [shape = 'u32[144,128]{1,0:T(1,128)}', space=vmem, size = 0x12000, scoped, tag = 'internal scratch']
  %s0 = inlined_call_operand.vmem [shape: f32[64,256], index: 0, kind: input, shape index: {}]
  %s1 = inlined_call_operand.vmem [shape: s32[64,256], index: 1, kind: input, shape index: {}]
  %s2 = inlined_call_operand.hbm [shape: f32[8,256], index: 2, kind: output, shape index: {}]
  %s3 = sld [smem:[#allocation0]]
  $region45: #{tpu_custom_call.1} parent=0
    _
  %s5 = ssub.s32 1, %s3
  %s6 = scalar_select 0, %s5, %s3
  $region1: #{tpu_custom_call.1} parent=0
    #allocation2 [shape = 'u8[8192]{0}', space=vmem, size = 0x2000, scoped, tag = 'output window, operand 0, single buffered']
    #allocation3 [shape = 's32[2]{0}', space=sflag, size = 0x8, scoped, tag = 'scoped memory for tpu_custom_call.1']
    %7 = vsyncpa [#allocation3], 0
    loop: start=0, step=1, limit=4
    $region2: #{tpu_custom_call.1} parent=1 // loop_pre_header
      _
    $region3: #{tpu_custom_call.1} parent=1 // loop_header
      %s9 = sphi 0, %s13
      %p10 = scmp.ge.s32.totalorder %s9, 4
      %s16 = sphi 0, %s28
      %s17 = sphi 0, %s24
      %s18 = sphi 0, %s16
      %s19 = sphi 0, %s17
      %s20 = sphi 0, %s18
      %s21 = sphi 0, %s19
      %s35 = sphi 0, %s37
      %s38 = sphi 0, %s35
      %s39 = sphi 0, %s38
      %s55 = sphi 0, %s39
      %s65 = sphi 0, %s67
      %s68 = sphi 0, %s65
      %s69 = sphi 0, %s68
      %s85 = sphi 0, %s69
      %s91 = sphi 0, %s93
      %s94 = sphi 0, %s91
      %s95 = sphi 0, %s94
      %s111 = sphi 0, %s95
    $region4: #{tpu_custom_call.1} parent=1 // loop_header_branch
      %12 = sbr.rel (%p10) target = $region8
    $region5: #{tpu_custom_call.1} parent=1 // loop_body
      %s14 = ssub.s32 %s9, 1
      %s15 = ssub.s32 %s9, 2
      %s22 = sadd.s32 1, %s17
      %p23 = scmp.ge.s32.totalorder %s22, 2
      %s24 = scalar_select %p23, 0, %s22
      %s25 = sadd.s32 1, %s16
      %s26 = scalar_select %p23, %s25, %s16
      %p27 = scmp.ge.s32.totalorder %s26, 1
      %s28 = scalar_select %p27, 0, %s26
      %s29 = smul.u32 %s16, 2
      %s30 = sadd.s32 %s29, %s17
      %s31 = smul.u32 %s28, 2
      %s32 = sadd.s32 %s31, %s24
      %s33 = ssub.s32 %s30, %s32
      %p34 = scmp.eq.s32.totalorder %s33, 0
      %s36 = sadd.s32 %s35, 1
      %s37 = scalar_select %p34, %s35, %s36
      %p40 = pneg %p34
      %p41 = scmp.eq.s32.totalorder %s9, 1
      %p42 = por %p40, %p41
      %p43 = scmp.ne.s32.totalorder %s35, %s38
      %p44 = scmp.eq.s32.totalorder %s9, 0
      %p45 = por %p43, %p44
      %p46 = scmp.ne.s32.totalorder %s35, %s38
      %p47 = scmp.eq.s32.totalorder %s14, 1
      %p48 = por %p46, %p47
      %p49 = scmp.ne.s32.totalorder %s38, %s39
      %p50 = scmp.eq.s32.totalorder %s14, 0
      %p51 = por %p49, %p50
      %p52 = scmp.ne.s32.totalorder %s38, %s39
      %p53 = scmp.eq.s32.totalorder %s15, 1
      %p54 = por %p52, %p53
      %p56 = scmp.ne.s32.totalorder %s39, %s55
      %p57 = scmp.eq.s32.totalorder %s15, 0
      %p58 = por %p56, %p57
      %s59 = smul.u32 %s16, 2
      %s60 = sadd.s32 %s59, %s17
      %s61 = smul.u32 %s28, 2
      %s62 = sadd.s32 %s61, %s24
      %s63 = ssub.s32 %s60, %s62
      %p64 = scmp.eq.s32.totalorder %s63, 0
      %s66 = sadd.s32 %s65, 1
      %s67 = scalar_select %p64, %s65, %s66
      %p70 = pneg %p64
      %p71 = scmp.eq.s32.totalorder %s9, 1
      %p72 = por %p70, %p71
      %p73 = scmp.ne.s32.totalorder %s65, %s68
      %p74 = scmp.eq.s32.totalorder %s9, 0
      %p75 = por %p73, %p74
      %p76 = scmp.ne.s32.totalorder %s65, %s68
      %p77 = scmp.eq.s32.totalorder %s14, 1
      %p78 = por %p76, %p77
      %p79 = scmp.ne.s32.totalorder %s68, %s69
      %p80 = scmp.eq.s32.totalorder %s14, 0
      %p81 = por %p79, %p80
      %p82 = scmp.ne.s32.totalorder %s68, %s69
      %p83 = scmp.eq.s32.totalorder %s15, 1
      %p84 = por %p82, %p83
      %p86 = scmp.ne.s32.totalorder %s69, %s85
      %p87 = scmp.eq.s32.totalorder %s15, 0
      %p88 = por %p86, %p87
      %s89 = ssub.s32 %s16, %s28
      %p90 = scmp.eq.s32.totalorder %s89, 0
      %s92 = sadd.s32 %s91, 1
      %s93 = scalar_select %p90, %s91, %s92
      %p96 = pneg %p90
      %p97 = scmp.eq.s32.totalorder %s9, 1
      %p98 = por %p96, %p97
      %p99 = scmp.ne.s32.totalorder %s91, %s94
      %p100 = scmp.eq.s32.totalorder %s9, 0
      %p101 = por %p99, %p100
      %p102 = scmp.ne.s32.totalorder %s91, %s94
      %p103 = scmp.eq.s32.totalorder %s14, 1
      %p104 = por %p102, %p103
      %p105 = scmp.ne.s32.totalorder %s94, %s95
      %p106 = scmp.eq.s32.totalorder %s14, 0
      %p107 = por %p105, %p106
      %p108 = scmp.ne.s32.totalorder %s94, %s95
      %p109 = scmp.eq.s32.totalorder %s15, 1
      %p110 = por %p108, %p109
      %p112 = scmp.ne.s32.totalorder %s95, %s111
      %p113 = scmp.eq.s32.totalorder %s15, 0
      %p114 = por %p112, %p113
      %p115 = scmp.le.s32.totalorder 1, %s9
      %p116 = scmp.lt.s32.totalorder %s9, 3
      %p117 = pnand %p115, %p116
      %p118 = pneg %p117
      // Predicated region
      $region9: #{tpu_custom_call.1} parent=5 // pred_check
        _
      $region10: #{tpu_custom_call.1} parent=5 // pred_check_branch
        %120 = sbr.rel (%p117) target = $region12
      $region11: #{tpu_custom_call.1} parent=5 // pred_region
        %s121 = ssub.s32 %s9, 1
      $region12: #{tpu_custom_call.1} parent=5 // pred_fallthru
        _
      %p122 = scmp.lt.s32.totalorder %s9, 2
      // Predicated region
      $region13: #{tpu_custom_call.1} parent=5 // pred_check
        %p123 = pneg %p122
      $region14: #{tpu_custom_call.1} parent=5 // pred_check_branch
        %125 = sbr.rel (%p123) target = $region16
      $region15: #{tpu_custom_call.1} parent=5 // pred_region
        // Predicated region
        $region17: #{tpu_custom_call.1} parent=15 // pred_check
          %p126 = pneg %p45
        $region18: #{tpu_custom_call.1} parent=15 // pred_check_branch
          %128 = sbr.rel (%p126) target = $region20
        $region19: #{tpu_custom_call.1} parent=15 // pred_region
          %s129 = smul.u32 %s16, 2
          %s130 = sadd.s32 %s129, %s17
          %s131 = smul.u32 4, %s130
          %p132 = scmp.lt.s32.totalorder %s131, 7
          %s133 = scalar_select %p132, %s131, 7
          %s134 = smul.addr %s133, 2
          %s135 = smul.addr %s134, 8
          %s136 = scalar_lea.vmem %s0, %s135
          %s137 = smul.u32 %s16, 2
          %s138 = sadd.s32 %s137, %s17
          %s139 = smul.u32 4, %s138
        $region20: #{tpu_custom_call.1} parent=15 // pred_fallthru
          _
        // Predicated region
        $region21: #{tpu_custom_call.1} parent=15 // pred_check
          %p140 = pneg %p75
        $region22: #{tpu_custom_call.1} parent=15 // pred_check_branch
          %142 = sbr.rel (%p140) target = $region24
        $region23: #{tpu_custom_call.1} parent=15 // pred_region
          %s143 = smul.u32 %s16, 2
          %s144 = sadd.s32 %s143, %s17
          %s145 = smul.u32 4, %s144
          %p146 = scmp.lt.s32.totalorder %s145, 7
          %s147 = scalar_select %p146, %s145, 7
          %s148 = smul.addr %s147, 2
          %s149 = smul.addr %s148, 8
          %s150 = scalar_lea.vmem %s1, %s149
          %s151 = smul.u32 %s16, 2
          %s152 = sadd.s32 %s151, %s17
          %s153 = smul.u32 4, %s152
        $region24: #{tpu_custom_call.1} parent=15 // pred_fallthru
          _
      $region16: #{tpu_custom_call.1} parent=5 // pred_fallthru
        _
      %p154 = scmp.le.s32.totalorder 1, %s9
      %p155 = scmp.lt.s32.totalorder %s9, 3
      %p156 = pnand %p154, %p155
      %p157 = pneg %p156
      // Predicated region
      $region25: #{tpu_custom_call.1} parent=5 // pred_check
        _
      $region26: #{tpu_custom_call.1} parent=5 // pred_check_branch
        %159 = sbr.rel (%p156) target = $region28
      $region27: #{tpu_custom_call.1} parent=5 // pred_region
        %s160 = ssub.s32 %s9, 1
        %s161 = smul.u32 %s18, 2
        %s162 = sadd.s32 %s161, %s19
        %s163 = smul.u32 4, %s162
        %p164 = scmp.lt.s32.totalorder %s163, 7
        %s165 = scalar_select %p164, %s163, 7
        %s166 = smul.addr %s165, 2
        %s167 = smul.addr %s166, 8
        %s168 = scalar_lea.vmem %s0, %s167
        %p169 = pneg %p51
        %p170 = pneg %p48
        %s171 = smul.u32 %s18, 2
        %s172 = sadd.s32 %s171, %s19
        %s173 = smul.u32 4, %s172
        %p174 = scmp.lt.s32.totalorder %s173, 7
        %s175 = scalar_select %p174, %s173, 7
        %s176 = smul.addr %s175, 2
        %s177 = smul.addr %s176, 8
        %s178 = scalar_lea.vmem %s1, %s177
        %p179 = pneg %p81
        %p180 = pneg %p78
        %p181 = pneg %p107
        %p182 = pneg %p104
        %s183 = smul.u32 %s18, 2
        %s184 = sadd.s32 %s183, %s19
        %s185 = smul.u32 4, %s184
        %p186 = scmp.lt.s32.totalorder %s185, 7
        %s187 = scalar_select %p186, %s185, 7
        %s188 = smul.addr %s187, 2
        %s189 = smul.addr %s188, 8
        %s190 = scalar_lea.vmem %s0, %s189
        %s191 = smul.u32 %s18, 2
        %s192 = sadd.s32 %s191, %s19
        %s193 = smul.u32 4, %s192
        %s194 = smul.u32 %s18, 2
        %s195 = sadd.s32 %s194, %s19
        %s196 = smul.u32 4, %s195
        %p197 = scmp.lt.s32.totalorder %s196, 7
        %s198 = scalar_select %p197, %s196, 7
        %s199 = smul.addr %s198, 2
        %s200 = smul.addr %s199, 8
        %s201 = scalar_lea.vmem %s1, %s200
        %s202 = smul.u32 %s18, 2
        %s203 = sadd.s32 %s202, %s19
        %s204 = smul.u32 4, %s203
        %p205 = scmp.eq.s32.totalorder %s19, 0
        // Predicated region
        $region29: #{tpu_custom_call.1} parent=27 // pred_check
          %p206 = pneg %p205
        $region30: #{tpu_custom_call.1} parent=27 // pred_check_branch
          %208 = sbr.rel (%p206) target = $region32
        $region31: #{tpu_custom_call.1} parent=27 // pred_region
          %209 = vst [vmem:[#allocation2] sm:$0xff] 0.0
          %210 = vst [vmem:[#allocation2 + $0x8] sm:$0xff] 0.0
        $region32: #{tpu_custom_call.1} parent=27 // pred_fallthru
          _
        %v211 = vld [vmem:[%s190] sm:$0xff]
        %v212 = vld [vmem:[%s190 + $0x8] sm:$0xff]
        %v213 = vld [vmem:[%s190 + $0x10] sm:$0xff]
        %v214 = vld [vmem:[%s190 + $0x18] sm:$0xff]
        %v215 = vld [vmem:[%s190 + $0x20] sm:$0xff]
        %v216 = vld [vmem:[%s190 + $0x28] sm:$0xff]
        %v217 = vld [vmem:[%s190 + $0x30] sm:$0xff]
        %v218 = vld [vmem:[%s190 + $0x38] sm:$0xff]
        %v219 = vld [vmem:[%s201] sm:$0xff]
        %v220 = vld [vmem:[%s201 + $0x8] sm:$0xff]
        %v221 = vld [vmem:[%s201 + $0x10] sm:$0xff]
        %v222 = vld [vmem:[%s201 + $0x18] sm:$0xff]
        %v223 = vld [vmem:[%s201 + $0x20] sm:$0xff]
        %v224 = vld [vmem:[%s201 + $0x28] sm:$0xff]
        %v225 = vld [vmem:[%s201 + $0x30] sm:$0xff]
        %v226 = vld [vmem:[%s201 + $0x38] sm:$0xff]
        %vm227 = vcmp.ne.s32.totalorder %v219, 0
        %vm228 = vcmp.ne.s32.totalorder %v220, 0
        %vm229 = vcmp.ne.s32.totalorder %v221, 0
        %vm230 = vcmp.ne.s32.totalorder %v222, 0
        %vm231 = vcmp.ne.s32.totalorder %v223, 0
        %vm232 = vcmp.ne.s32.totalorder %v224, 0
        %vm233 = vcmp.ne.s32.totalorder %v225, 0
        %vm234 = vcmp.ne.s32.totalorder %v226, 0
        %v235 = vadd.f32 %v211, 1e-07
        %v236 = vadd.f32 %v212, 1e-07
        %v237 = vadd.f32 %v213, 1e-07
        %v238 = vadd.f32 %v214, 1e-07
        %v239 = vadd.f32 %v215, 1e-07
        %v240 = vadd.f32 %v216, 1e-07
        %v241 = vadd.f32 %v217, 1e-07
        %v242 = vadd.f32 %v218, 1e-07
        %v243 = vlog2.pop %v235
        %v244 = vmul.f32 %v243, 0.6931472
        %v245 = vlog2.pop %v236
        %v246 = vmul.f32 %v245, 0.6931472
        %v247 = vlog2.pop %v237
        %v248 = vmul.f32 %v247, 0.6931472
        %v249 = vlog2.pop %v238
        %v250 = vmul.f32 %v249, 0.6931472
        %v251 = vlog2.pop %v239
        %v252 = vmul.f32 %v251, 0.6931472
        %v253 = vlog2.pop %v240
        %v254 = vmul.f32 %v253, 0.6931472
        %v255 = vlog2.pop %v241
        %v256 = vmul.f32 %v255, 0.6931472
        %v257 = vlog2.pop %v242
        %v258 = vmul.f32 %v257, 0.6931472
        %v259 = vsel %vm227, %v244, 0.0
        %v260 = vsel %vm228, %v246, 0.0
        %v261 = vsel %vm229, %v248, 0.0
        %v262 = vsel %vm230, %v250, 0.0
        %v263 = vsel %vm231, %v252, 0.0
        %v264 = vsel %vm232, %v254, 0.0
        %v265 = vsel %vm233, %v256, 0.0
        %v266 = vsel %vm234, %v258, 0.0
        %v267 = vld [vmem:[#allocation2] sm:$0xff]
        %v268 = vld [vmem:[#allocation2 + $0x8] sm:$0xff]
        %v269 = vadd.f32 %v259, %v261
        %v270 = vadd.f32 %v269, %v263
        %v271 = vadd.f32 %v270, %v265
        %v272 = vadd.f32 %v260, %v262
        %v273 = vadd.f32 %v272, %v264
        %v274 = vadd.f32 %v273, %v266
        %v275 = vadd.f32 %v267, %v271
        %v276 = vadd.f32 %v268, %v274
        %277 = vst [vmem:[#allocation2] sm:$0xff] %v275
        %278 = vst [vmem:[#allocation2 + $0x8] sm:$0xff] %v276
        // Predicated region
        $region33: #{tpu_custom_call.1} parent=27 // pred_check
          %p279 = pneg %p104
        $region34: #{tpu_custom_call.1} parent=27 // pred_check_branch
          %281 = sbr.rel (%p279) target = $region36
        $region35: #{tpu_custom_call.1} parent=27 // pred_region
          %s283 = ssub.s32 256, 256
          %284 = vsyncadd [#allocation3], %s283
          %s285 = smul.addr %s18, 2
          %s286 = smul.addr %s285, 128
          %s287 = scalar_lea.hbm %s2, %s286
          %s289 = sshll.u32 [#allocation2], 4
          %s290 = int_to_ptr.vmem [resolvable:$true] %s289
          %292 = dma.vmem_to_hbm [thread:$0]  %s290, 256, %s287, [#allocation3]
        $region36: #{tpu_custom_call.1} parent=27 // pred_fallthru
          _
        // Predicated region
        $region37: #{tpu_custom_call.1} parent=27 // pred_check
          %p293 = pneg %p104
        $region38: #{tpu_custom_call.1} parent=27 // pred_check_branch
          %295 = sbr.rel (%p293) target = $region40
        $region39: #{tpu_custom_call.1} parent=27 // pred_region
          %296 = dma.done [#allocation3], 256
        $region40: #{tpu_custom_call.1} parent=27 // pred_fallthru
          _
      $region28: #{tpu_custom_call.1} parent=5 // pred_fallthru
        _
      %p297 = scmp.le.s32.totalorder 2, %s9
      // Predicated region
      $region41: #{tpu_custom_call.1} parent=5 // pred_check
        %p298 = pneg %p297
      $region42: #{tpu_custom_call.1} parent=5 // pred_check_branch
        %300 = sbr.rel (%p298) target = $region44
      $region43: #{tpu_custom_call.1} parent=5 // pred_region
        %s301 = ssub.s32 %s9, 2
      $region44: #{tpu_custom_call.1} parent=5 // pred_fallthru
        _
    $region6: #{tpu_custom_call.1} parent=1 // loop_footer
      %s13 = sadd.s32 1, %s9
    $region7: #{tpu_custom_call.1} parent=1 // loop_footer_branch
      %8 = sbr.rel target = $region3
    $region8: #{tpu_custom_call.1} parent=1 // loop_exit
      _
    %302 = vsyncpa [#allocation3], 1
    %s303 = scalar_lea.sflag [#allocation3], 1
    %304 = vsyncpa %s303, 1

// kernel: tpu_custom_call.1
$region0: #{tpu_custom_call.1}
  #allocation0 [shape = 'u32[]', space=smem, size = 0x4, offset = 0x4, fixed_abs, tag = 'smem constant byte address 0x4 - core index']
  #allocation1 [shape = 'u32[144,128]{1,0:T(1,128)}', space=vmem, size = 0x12000, scoped, tag = 'internal scratch']
  %s0 = inlined_call_operand.hbm [shape: f32[200,128], index: 0, kind: input, shape index: {}]
  %s1 = inlined_call_operand.hbm [shape: s8[200,128], index: 1, kind: input, shape index: {}]
  %s2 = inlined_call_operand.hbm [shape: f32[8,128], index: 2, kind: output, shape index: {}]
  %s3 = sld [smem:[#allocation0]]
  $region61: #{tpu_custom_call.1} parent=0
    _
  %s5 = ssub.s32 1, %s3
  %s6 = scalar_select 0, %s5, %s3
  $region1: #{tpu_custom_call.1} parent=0
    #allocation2 [shape = 'u8[196608]{0}', space=vmem, size = 0x30000, scoped, tag = 'input window, operand 0']
    #allocation3 [shape = 's32[2]{0}', space=sflag, size = 0x8, scoped, tag = 'scoped memory for tpu_custom_call.1']
    #allocation4 [shape = 's32[2]{0}', space=sflag, size = 0x8, scoped, tag = 'scoped memory for tpu_custom_call.1']
    #allocation5 [shape = 'u8[49152]{0}', space=vmem, size = 0xc000, scoped, tag = 'input window, operand 1']
    #allocation6 [shape = 's32[2]{0}', space=sflag, size = 0x8, scoped, tag = 'scoped memory for tpu_custom_call.1']
    #allocation7 [shape = 'u8[4096]{0}', space=vmem, size = 0x1000, scoped, tag = 'output window, operand 0, single buffered']
    %7 = vsyncpa [#allocation3], 0
    %s8 = scalar_lea.sflag [#allocation3], 1
    %9 = vsyncpa %s8, 0
    %10 = vsyncpa [#allocation6], 0
    %s11 = scalar_lea.sflag [#allocation6], 1
    %12 = vsyncpa %s11, 0
    %13 = vsyncpa [#allocation4], 0
    loop: start=0, step=1, limit=4
    $region2: #{tpu_custom_call.1} parent=1 // loop_pre_header
      _
    $region3: #{tpu_custom_call.1} parent=1 // loop_header
      %s15 = sphi 0, %s19
      %p16 = scmp.ge.s32.totalorder %s15, 4
      %s22 = sphi 0, %s34
      %s23 = sphi 0, %s30
      %s24 = sphi 0, %s22
      %s25 = sphi 0, %s23
      %s26 = sphi 0, %s24
      %s27 = sphi 0, %s25
      %s41 = sphi 0, %s43
      %s44 = sphi 0, %s41
      %s45 = sphi 0, %s44
      %s61 = sphi 0, %s45
      %s71 = sphi 0, %s73
      %s74 = sphi 0, %s71
      %s75 = sphi 0, %s74
      %s91 = sphi 0, %s75
      %s97 = sphi 0, %s99
      %s100 = sphi 0, %s97
      %s101 = sphi 0, %s100
      %s117 = sphi 0, %s101
    $region4: #{tpu_custom_call.1} parent=1 // loop_header_branch
      %18 = sbr.rel (%p16) target = $region8
    $region5: #{tpu_custom_call.1} parent=1 // loop_body
      %s20 = ssub.s32 %s15, 1
      %s21 = ssub.s32 %s15, 2
      %s28 = sadd.s32 1, %s23
      %p29 = scmp.ge.s32.totalorder %s28, 2
      %s30 = scalar_select %p29, 0, %s28
      %s31 = sadd.s32 1, %s22
      %s32 = scalar_select %p29, %s31, %s22
      %p33 = scmp.ge.s32.totalorder %s32, 1
      %s34 = scalar_select %p33, 0, %s32
      %s35 = smul.u32 %s22, 2
      %s36 = sadd.s32 %s35, %s23
      %s37 = smul.u32 %s34, 2
      %s38 = sadd.s32 %s37, %s30
      %s39 = ssub.s32 %s36, %s38
      %p40 = scmp.eq.s32.totalorder %s39, 0
      %s42 = sadd.s32 %s41, 1
      %s43 = scalar_select %p40, %s41, %s42
      %p46 = pneg %p40
      %p47 = scmp.eq.s32.totalorder %s15, 1
      %p48 = por %p46, %p47
      %p49 = scmp.ne.s32.totalorder %s41, %s44
      %p50 = scmp.eq.s32.totalorder %s15, 0
      %p51 = por %p49, %p50
      %p52 = scmp.ne.s32.totalorder %s41, %s44
      %p53 = scmp.eq.s32.totalorder %s20, 1
      %p54 = por %p52, %p53
      %p55 = scmp.ne.s32.totalorder %s44, %s45
      %p56 = scmp.eq.s32.totalorder %s20, 0
      %p57 = por %p55, %p56
      %p58 = scmp.ne.s32.totalorder %s44, %s45
      %p59 = scmp.eq.s32.totalorder %s21, 1
      %p60 = por %p58, %p59
      %p62 = scmp.ne.s32.totalorder %s45, %s61
      %p63 = scmp.eq.s32.totalorder %s21, 0
      %p64 = por %p62, %p63
      %s65 = smul.u32 %s22, 2
      %s66 = sadd.s32 %s65, %s23
      %s67 = smul.u32 %s34, 2
      %s68 = sadd.s32 %s67, %s30
      %s69 = ssub.s32 %s66, %s68
      %p70 = scmp.eq.s32.totalorder %s69, 0
      %s72 = sadd.s32 %s71, 1
      %s73 = scalar_select %p70, %s71, %s72
      %p76 = pneg %p70
      %p77 = scmp.eq.s32.totalorder %s15, 1
      %p78 = por %p76, %p77
      %p79 = scmp.ne.s32.totalorder %s71, %s74
      %p80 = scmp.eq.s32.totalorder %s15, 0
      %p81 = por %p79, %p80
      %p82 = scmp.ne.s32.totalorder %s71, %s74
      %p83 = scmp.eq.s32.totalorder %s20, 1
      %p84 = por %p82, %p83
      %p85 = scmp.ne.s32.totalorder %s74, %s75
      %p86 = scmp.eq.s32.totalorder %s20, 0
      %p87 = por %p85, %p86
      %p88 = scmp.ne.s32.totalorder %s74, %s75
      %p89 = scmp.eq.s32.totalorder %s21, 1
      %p90 = por %p88, %p89
      %p92 = scmp.ne.s32.totalorder %s75, %s91
      %p93 = scmp.eq.s32.totalorder %s21, 0
      %p94 = por %p92, %p93
      %s95 = ssub.s32 %s22, %s34
      %p96 = scmp.eq.s32.totalorder %s95, 0
      %s98 = sadd.s32 %s97, 1
      %s99 = scalar_select %p96, %s97, %s98
      %p102 = pneg %p96
      %p103 = scmp.eq.s32.totalorder %s15, 1
      %p104 = por %p102, %p103
      %p105 = scmp.ne.s32.totalorder %s97, %s100
      %p106 = scmp.eq.s32.totalorder %s15, 0
      %p107 = por %p105, %p106
      %p108 = scmp.ne.s32.totalorder %s97, %s100
      %p109 = scmp.eq.s32.totalorder %s20, 1
      %p110 = por %p108, %p109
      %p111 = scmp.ne.s32.totalorder %s100, %s101
      %p112 = scmp.eq.s32.totalorder %s20, 0
      %p113 = por %p111, %p112
      %p114 = scmp.ne.s32.totalorder %s100, %s101
      %p115 = scmp.eq.s32.totalorder %s21, 1
      %p116 = por %p114, %p115
      %p118 = scmp.ne.s32.totalorder %s101, %s117
      %p119 = scmp.eq.s32.totalorder %s21, 0
      %p120 = por %p118, %p119
      %p121 = scmp.le.s32.totalorder 1, %s15
      %p122 = scmp.lt.s32.totalorder %s15, 3
      %p123 = pnand %p121, %p122
      %p124 = pneg %p123
      // Predicated region
      $region9: #{tpu_custom_call.1} parent=5 // pred_check
        _
      $region10: #{tpu_custom_call.1} parent=5 // pred_check_branch
        %126 = sbr.rel (%p123) target = $region12
      $region11: #{tpu_custom_call.1} parent=5 // pred_region
        %s127 = ssub.s32 %s15, 1
      $region12: #{tpu_custom_call.1} parent=5 // pred_fallthru
        _
      %p128 = scmp.lt.s32.totalorder %s15, 2
      // Predicated region
      $region13: #{tpu_custom_call.1} parent=5 // pred_check
        %p129 = pneg %p128
      $region14: #{tpu_custom_call.1} parent=5 // pred_check_branch
        %131 = sbr.rel (%p129) target = $region16
      $region15: #{tpu_custom_call.1} parent=5 // pred_region
        // Predicated region
        $region17: #{tpu_custom_call.1} parent=15 // pred_check
          %p132 = pneg %p51
        $region18: #{tpu_custom_call.1} parent=15 // pred_check_branch
          %134 = sbr.rel (%p132) target = $region20
        $region19: #{tpu_custom_call.1} parent=15 // pred_region
          %s135 = sand.u32 %s41, 1
          %s136 = scalar_lea.sflag [#allocation3], %s135
          %s137 = sand.u32 %s41, 1
          %s138 = smul.addr %s137, 192
          %s139 = scalar_lea.vmem [#allocation2], %s138
          %s140 = smul.u32 %s22, 2
          %s141 = sadd.s32 %s140, %s23
          %s142 = smul.u32 24, %s141
          %s143 = ssub.s32 25, %s142
          %p144 = scmp.lt.s32.totalorder %s143, 24
          %s145 = scalar_select %p144, %s143, 24
          %s146 = smul.u32 128, %s145
          %s148 = ssub.s32 3072, %s146
          %149 = vsyncadd %s136, %s148
          %p150 = scmp.ne.s32.totalorder 0, %s146
          %s151 = smul.addr %s142, 128
          %s152 = scalar_lea.hbm %s0, %s151
          %s153 = smul.u32 8, %s145
          %s154 = sshll.u32 %s139, 4
          %s155 = int_to_ptr.vmem [resolvable:$true] %s154
          %s156 = sshll.u32 %s153, 4
          %160 = dma.hbm_to_vmem [thread:$0]  (%p150), %s152, %s156, %s155, %s136, 128, 128, 8
        $region20: #{tpu_custom_call.1} parent=15 // pred_fallthru
          _
        // Predicated region
        $region21: #{tpu_custom_call.1} parent=15 // pred_check
          %p161 = pneg %p81
        $region22: #{tpu_custom_call.1} parent=15 // pred_check_branch
          %163 = sbr.rel (%p161) target = $region24
        $region23: #{tpu_custom_call.1} parent=15 // pred_region
          %s164 = sand.u32 %s71, 1
          %s165 = scalar_lea.sflag [#allocation6], %s164
          %s166 = sand.u32 %s71, 1
          %s167 = smul.addr %s166, 48
          %s168 = scalar_lea.vmem [#allocation5], %s167
          %s169 = smul.u32 %s22, 2
          %s170 = sadd.s32 %s169, %s23
          %s171 = smul.u32 24, %s170
          %s172 = ssub.s32 25, %s171
          %p173 = scmp.lt.s32.totalorder %s172, 24
          %s174 = scalar_select %p173, %s172, 24
          %s175 = smul.u32 32, %s174
          %s177 = ssub.s32 768, %s175
          %178 = vsyncadd %s165, %s177
          %p179 = scmp.ne.s32.totalorder 0, %s175
          %s180 = smul.addr %s171, 32
          %s181 = scalar_lea.hbm %s1, %s180
          %s182 = smul.u32 2, %s174
          %s183 = sshll.u32 %s168, 4
          %s184 = int_to_ptr.vmem [resolvable:$true] %s183
          %s185 = sshll.u32 %s182, 4
          %189 = dma.hbm_to_vmem [thread:$0]  (%p179), %s181, %s185, %s184, %s165, 32, 32, 2
        $region24: #{tpu_custom_call.1} parent=15 // pred_fallthru
          _
      $region16: #{tpu_custom_call.1} parent=5 // pred_fallthru
        _
      %p190 = scmp.le.s32.totalorder 1, %s15
      %p191 = scmp.lt.s32.totalorder %s15, 3
      %p192 = pnand %p190, %p191
      %p193 = pneg %p192
      // Predicated region
      $region25: #{tpu_custom_call.1} parent=5 // pred_check
        _
      $region26: #{tpu_custom_call.1} parent=5 // pred_check_branch
        %195 = sbr.rel (%p192) target = $region28
      $region27: #{tpu_custom_call.1} parent=5 // pred_region
        %s196 = ssub.s32 %s15, 1
        %s197 = sand.u32 %s44, 1
        %s198 = scalar_lea.sflag [#allocation3], %s197
        %s199 = sand.u32 %s44, 1
        %s200 = smul.addr %s199, 192
        %s201 = scalar_lea.vmem [#allocation2], %s200
        // Predicated region
        $region29: #{tpu_custom_call.1} parent=27 // pred_check
          %p202 = pneg %p57
        $region30: #{tpu_custom_call.1} parent=27 // pred_check_branch
          %204 = sbr.rel (%p202) target = $region32
        $region31: #{tpu_custom_call.1} parent=27 // pred_region
          %205 = dma.done %s198, 3072
        $region32: #{tpu_custom_call.1} parent=27 // pred_fallthru
          _
        %s206 = sand.u32 %s74, 1
        %s207 = scalar_lea.sflag [#allocation6], %s206
        %s208 = sand.u32 %s74, 1
        %s209 = smul.addr %s208, 48
        %s210 = scalar_lea.vmem [#allocation5], %s209
        // Predicated region
        $region33: #{tpu_custom_call.1} parent=27 // pred_check
          %p211 = pneg %p87
        $region34: #{tpu_custom_call.1} parent=27 // pred_check_branch
          %213 = sbr.rel (%p211) target = $region36
        $region35: #{tpu_custom_call.1} parent=27 // pred_region
          %214 = dma.done %s207, 768
        $region36: #{tpu_custom_call.1} parent=27 // pred_fallthru
          _
        %s215 = sand.u32 %s44, 1
        %s216 = scalar_lea.sflag [#allocation3], %s215
        %s217 = sand.u32 %s44, 1
        %s218 = smul.addr %s217, 192
        %s219 = scalar_lea.vmem [#allocation2], %s218
        %p220 = pneg %p57
        %p221 = pneg %p54
        %s222 = sand.u32 %s74, 1
        %s223 = scalar_lea.sflag [#allocation6], %s222
        %s224 = sand.u32 %s74, 1
        %s225 = smul.addr %s224, 48
        %s226 = scalar_lea.vmem [#allocation5], %s225
        %p227 = pneg %p87
        %p228 = pneg %p84
        %p229 = pneg %p113
        %p230 = pneg %p110
        %s231 = smul.u32 %s24, 2
        %s232 = sadd.s32 %s231, %s25
        %s233 = smul.u32 24, %s232
        %s234 = ssub.s32 25, %s233
        %p235 = scmp.lt.s32.totalorder %s234, 24
        %s236 = scalar_select %p235, %s234, 24
        %s237 = smul.u32 128, %s236
        %s238 = smul.u32 %s24, 2
        %s239 = sadd.s32 %s238, %s25
        %s240 = smul.u32 24, %s239
        %s241 = ssub.s32 25, %s240
        %p242 = scmp.lt.s32.totalorder %s241, 24
        %s243 = scalar_select %p242, %s241, 24
        %s244 = smul.u32 32, %s243
        %p247 = scmp.eq.s32.totalorder %s25, 0
        // Predicated region
        $region37: #{tpu_custom_call.1} parent=27 // pred_check
          %p248 = pneg %p247
        $region38: #{tpu_custom_call.1} parent=27 // pred_check_branch
          %250 = sbr.rel (%p248) target = $region40
        $region39: #{tpu_custom_call.1} parent=27 // pred_region
          %251 = vst [vmem:[#allocation7] sm:$0xff] 0.0
        $region40: #{tpu_custom_call.1} parent=27 // pred_fallthru
          _
        %s252 = smul.u32 %s24, 2
        %s253 = sadd.s32 %s252, %s25
        %p254 = scmp.lt.s32.totalorder %s253, 1
        // Predicated region
        $region41: #{tpu_custom_call.1} parent=27 // pred_check
          %p255 = pneg %p254
        $region42: #{tpu_custom_call.1} parent=27 // pred_check_branch
          %257 = sbr.rel (%p255) target = $region44
        $region43: #{tpu_custom_call.1} parent=27 // pred_region
          %v258 = vld [vmem:[%s201] sm:$0xff]
          %v259 = vld [vmem:[%s201 + $0x8] sm:$0xff]
          %v260 = vld [vmem:[%s201 + $0x10] sm:$0xff]
          %v261 = vld [vmem:[%s201 + $0x18] sm:$0xff]
          %v262 = vld [vmem:[%s201 + $0x20] sm:$0xff]
          %v263 = vld [vmem:[%s201 + $0x28] sm:$0xff]
          %v264 = vld [vmem:[%s201 + $0x30] sm:$0xff]
          %v265 = vld [vmem:[%s201 + $0x38] sm:$0xff]
          %v266 = vld [vmem:[%s201 + $0x40] sm:$0xff]
          %v267 = vld [vmem:[%s201 + $0x48] sm:$0xff]
          %v268 = vld [vmem:[%s201 + $0x50] sm:$0xff]
          %v269 = vld [vmem:[%s201 + $0x58] sm:$0xff]
          %v270 = vld [vmem:[%s201 + $0x60] sm:$0xff]
          %v271 = vld [vmem:[%s201 + $0x68] sm:$0xff]
          %v272 = vld [vmem:[%s201 + $0x70] sm:$0xff]
          %v273 = vld [vmem:[%s201 + $0x78] sm:$0xff]
          %v274 = vld [vmem:[%s201 + $0x80] sm:$0xff]
          %v275 = vld [vmem:[%s201 + $0x88] sm:$0xff]
          %v276 = vld [vmem:[%s201 + $0x90] sm:$0xff]
          %v277 = vld [vmem:[%s201 + $0x98] sm:$0xff]
          %v278 = vld [vmem:[%s201 + $0xa0] sm:$0xff]
          %v279 = vld [vmem:[%s201 + $0xa8] sm:$0xff]
          %v280 = vld [vmem:[%s201 + $0xb0] sm:$0xff]
          %v281 = vld [vmem:[%s201 + $0xb8] sm:$0xff]
          %v282 = vld [vmem:[%s210] sm:$0x3]
          %v283 = vld [vmem:[%s210 + $0x2] sm:$0x3]
          %v284 = vld [vmem:[%s210 + $0x4] sm:$0x3]
          %v285 = vld [vmem:[%s210 + $0x6] sm:$0x3]
          %v286 = vld [vmem:[%s210 + $0x8] sm:$0x3]
          %v287 = vld [vmem:[%s210 + $0xa] sm:$0x3]
          %v288 = vld [vmem:[%s210 + $0xc] sm:$0x3]
          %v289 = vld [vmem:[%s210 + $0xe] sm:$0x3]
          %v290 = vld [vmem:[%s210 + $0x10] sm:$0x3]
          %v291 = vld [vmem:[%s210 + $0x12] sm:$0x3]
          %v292 = vld [vmem:[%s210 + $0x14] sm:$0x3]
          %v293 = vld [vmem:[%s210 + $0x16] sm:$0x3]
          %v294 = vld [vmem:[%s210 + $0x18] sm:$0x3]
          %v295 = vld [vmem:[%s210 + $0x1a] sm:$0x3]
          %v296 = vld [vmem:[%s210 + $0x1c] sm:$0x3]
          %v297 = vld [vmem:[%s210 + $0x1e] sm:$0x3]
          %v298 = vld [vmem:[%s210 + $0x20] sm:$0x3]
          %v299 = vld [vmem:[%s210 + $0x22] sm:$0x3]
          %v300 = vld [vmem:[%s210 + $0x24] sm:$0x3]
          %v301 = vld [vmem:[%s210 + $0x26] sm:$0x3]
          %v302 = vld [vmem:[%s210 + $0x28] sm:$0x3]
          %v303 = vld [vmem:[%s210 + $0x2a] sm:$0x3]
          %v304 = vld [vmem:[%s210 + $0x2c] sm:$0x3]
          %v305 = vld [vmem:[%s210 + $0x2e] sm:$0x3]
          %vm306 = vnez %v282
          %vm307 = vnez %v283
          %vm308 = vnez %v284
          %vm309 = vnez %v285
          %vm310 = vnez %v286
          %vm311 = vnez %v287
          %vm312 = vnez %v288
          %vm313 = vnez %v289
          %vm314 = vnez %v290
          %vm315 = vnez %v291
          %vm316 = vnez %v292
          %vm317 = vnez %v293
          %vm318 = vnez %v294
          %vm319 = vnez %v295
          %vm320 = vnez %v296
          %vm321 = vnez %v297
          %vm322 = vnez %v298
          %vm323 = vnez %v299
          %vm324 = vnez %v300
          %vm325 = vnez %v301
          %vm326 = vnez %v302
          %vm327 = vnez %v303
          %vm328 = vnez %v304
          %vm329 = vnez %v305
          %v330 = vadd.f32 %v258, 1e-07
          %v331 = vadd.f32 %v259, 1e-07
          %v332 = vadd.f32 %v260, 1e-07
          %v333 = vadd.f32 %v261, 1e-07
          %v334 = vadd.f32 %v262, 1e-07
          %v335 = vadd.f32 %v263, 1e-07
          %v336 = vadd.f32 %v264, 1e-07
          %v337 = vadd.f32 %v265, 1e-07
          %v338 = vadd.f32 %v266, 1e-07
          %v339 = vadd.f32 %v267, 1e-07
          %v340 = vadd.f32 %v268, 1e-07
          %v341 = vadd.f32 %v269, 1e-07
          %v342 = vadd.f32 %v270, 1e-07
          %v343 = vadd.f32 %v271, 1e-07
          %v344 = vadd.f32 %v272, 1e-07
          %v345 = vadd.f32 %v273, 1e-07
          %v346 = vadd.f32 %v274, 1e-07
          %v347 = vadd.f32 %v275, 1e-07
          %v348 = vadd.f32 %v276, 1e-07
          %v349 = vadd.f32 %v277, 1e-07
          %v350 = vadd.f32 %v278, 1e-07
          %v351 = vadd.f32 %v279, 1e-07
          %v352 = vadd.f32 %v280, 1e-07
          %v353 = vadd.f32 %v281, 1e-07
          %v354 = vlog2.pop %v330
          %v355 = vmul.f32 %v354, 0.6931472
          %v356 = vlog2.pop %v331
          %v357 = vmul.f32 %v356, 0.6931472
          %v358 = vlog2.pop %v332
          %v359 = vmul.f32 %v358, 0.6931472
          %v360 = vlog2.pop %v333
          %v361 = vmul.f32 %v360, 0.6931472
          %v362 = vlog2.pop %v334
          %v363 = vmul.f32 %v362, 0.6931472
          %v364 = vlog2.pop %v335
          %v365 = vmul.f32 %v364, 0.6931472
          %v366 = vlog2.pop %v336
          %v367 = vmul.f32 %v366, 0.6931472
          %v368 = vlog2.pop %v337
          %v369 = vmul.f32 %v368, 0.6931472
          %v370 = vlog2.pop %v338
          %v371 = vmul.f32 %v370, 0.6931472
          %v372 = vlog2.pop %v339
          %v373 = vmul.f32 %v372, 0.6931472
          %v374 = vlog2.pop %v340
          %v375 = vmul.f32 %v374, 0.6931472
          %v376 = vlog2.pop %v341
          %v377 = vmul.f32 %v376, 0.6931472
          %v378 = vlog2.pop %v342
          %v379 = vmul.f32 %v378, 0.6931472
          %v380 = vlog2.pop %v343
          %v381 = vmul.f32 %v380, 0.6931472
          %v382 = vlog2.pop %v344
          %v383 = vmul.f32 %v382, 0.6931472
          %v384 = vlog2.pop %v345
          %v385 = vmul.f32 %v384, 0.6931472
          %v386 = vlog2.pop %v346
          %v387 = vmul.f32 %v386, 0.6931472
          %v388 = vlog2.pop %v347
          %v389 = vmul.f32 %v388, 0.6931472
          %v390 = vlog2.pop %v348
          %v391 = vmul.f32 %v390, 0.6931472
          %v392 = vlog2.pop %v349
          %v393 = vmul.f32 %v392, 0.6931472
          %v394 = vlog2.pop %v350
          %v395 = vmul.f32 %v394, 0.6931472
          %v396 = vlog2.pop %v351
          %v397 = vmul.f32 %v396, 0.6931472
          %v398 = vlog2.pop %v352
          %v399 = vmul.f32 %v398, 0.6931472
          %v400 = vlog2.pop %v353
          %v401 = vmul.f32 %v400, 0.6931472
          %v402 = vsel %vm306, 16843009, 0
          %v403 = vsel %vm307, 16843009, 0
          %v404 = vsel %vm308, 16843009, 0
          %v405 = vsel %vm309, 16843009, 0
          %v406 = vsel %vm310, 16843009, 0
          %v407 = vsel %vm311, 16843009, 0
          %v408 = vsel %vm312, 16843009, 0
          %v409 = vsel %vm313, 16843009, 0
          %v410 = vsel %vm314, 16843009, 0
          %v411 = vsel %vm315, 16843009, 0
          %v412 = vsel %vm316, 16843009, 0
          %v413 = vsel %vm317, 16843009, 0
          %v414 = vsel %vm318, 16843009, 0
          %v415 = vsel %vm319, 16843009, 0
          %v416 = vsel %vm320, 16843009, 0
          %v417 = vsel %vm321, 16843009, 0
          %v418 = vsel %vm322, 16843009, 0
          %v419 = vsel %vm323, 16843009, 0
          %v420 = vsel %vm324, 16843009, 0
          %v421 = vsel %vm325, 16843009, 0
          %v422 = vsel %vm326, 16843009, 0
          %v423 = vsel %vm327, 16843009, 0
          %v424 = vsel %vm328, 16843009, 0
          %v425 = vsel %vm329, 16843009, 0
          %v426 = vunpack.c.0.s8 %v402
          %v427 = vunpack.c.0.s8 %v403
          %v428 = vunpack.c.0.s8 %v404
          %v429 = vunpack.c.0.s8 %v405
          %v430 = vunpack.c.0.s8 %v406
          %v431 = vunpack.c.0.s8 %v407
          %v432 = vunpack.c.0.s8 %v408
          %v433 = vunpack.c.0.s8 %v409
          %v434 = vunpack.c.0.s8 %v410
          %v435 = vunpack.c.0.s8 %v411
          %v436 = vunpack.c.0.s8 %v412
          %v437 = vunpack.c.0.s8 %v413
          %v438 = vunpack.c.0.s8 %v414
          %v439 = vunpack.c.0.s8 %v415
          %v440 = vunpack.c.0.s8 %v416
          %v441 = vunpack.c.0.s8 %v417
          %v442 = vunpack.c.0.s8 %v418
          %v443 = vunpack.c.0.s8 %v419
          %v444 = vunpack.c.0.s8 %v420
          %v445 = vunpack.c.0.s8 %v421
          %v446 = vunpack.c.0.s8 %v422
          %v447 = vunpack.c.0.s8 %v423
          %v448 = vunpack.c.0.s8 %v424
          %v449 = vunpack.c.0.s8 %v425
          %vm450 = vcmp.ne.s32.totalorder %v426, 0
          %vm451 = vcmp.ne.s32.totalorder %v427, 0
          %vm452 = vcmp.ne.s32.totalorder %v428, 0
          %vm453 = vcmp.ne.s32.totalorder %v429, 0
          %vm454 = vcmp.ne.s32.totalorder %v430, 0
          %vm455 = vcmp.ne.s32.totalorder %v431, 0
          %vm456 = vcmp.ne.s32.totalorder %v432, 0
          %vm457 = vcmp.ne.s32.totalorder %v433, 0
          %vm458 = vcmp.ne.s32.totalorder %v434, 0
          %vm459 = vcmp.ne.s32.totalorder %v435, 0
          %vm460 = vcmp.ne.s32.totalorder %v436, 0
          %vm461 = vcmp.ne.s32.totalorder %v437, 0
          %vm462 = vcmp.ne.s32.totalorder %v438, 0
          %vm463 = vcmp.ne.s32.totalorder %v439, 0
          %vm464 = vcmp.ne.s32.totalorder %v440, 0
          %vm465 = vcmp.ne.s32.totalorder %v441, 0
          %vm466 = vcmp.ne.s32.totalorder %v442, 0
          %vm467 = vcmp.ne.s32.totalorder %v443, 0
          %vm468 = vcmp.ne.s32.totalorder %v444, 0
          %vm469 = vcmp.ne.s32.totalorder %v445, 0
          %vm470 = vcmp.ne.s32.totalorder %v446, 0
          %vm471 = vcmp.ne.s32.totalorder %v447, 0
          %vm472 = vcmp.ne.s32.totalorder %v448, 0
          %vm473 = vcmp.ne.s32.totalorder %v449, 0
          %v474 = vsel %vm450, %v355, 0.0
          %v475 = vsel %vm451, %v357, 0.0
          %v476 = vsel %vm452, %v359, 0.0
          %v477 = vsel %vm453, %v361, 0.0
          %v478 = vsel %vm454, %v363, 0.0
          %v479 = vsel %vm455, %v365, 0.0
          %v480 = vsel %vm456, %v367, 0.0
          %v481 = vsel %vm457, %v369, 0.0
          %v482 = vsel %vm458, %v371, 0.0
          %v483 = vsel %vm459, %v373, 0.0
          %v484 = vsel %vm460, %v375, 0.0
          %v485 = vsel %vm461, %v377, 0.0
          %v486 = vsel %vm462, %v379, 0.0
          %v487 = vsel %vm463, %v381, 0.0
          %v488 = vsel %vm464, %v383, 0.0
          %v489 = vsel %vm465, %v385, 0.0
          %v490 = vsel %vm466, %v387, 0.0
          %v491 = vsel %vm467, %v389, 0.0
          %v492 = vsel %vm468, %v391, 0.0
          %v493 = vsel %vm469, %v393, 0.0
          %v494 = vsel %vm470, %v395, 0.0
          %v495 = vsel %vm471, %v397, 0.0
          %v496 = vsel %vm472, %v399, 0.0
          %v497 = vsel %vm473, %v401, 0.0
          %v498 = vld [vmem:[#allocation7] sm:$0xff]
          %v499 = vadd.f32 %v474, %v475
          %v500 = vadd.f32 %v499, %v476
          %v501 = vadd.f32 %v500, %v477
          %v502 = vadd.f32 %v501, %v478
          %v503 = vadd.f32 %v502, %v479
          %v504 = vadd.f32 %v503, %v480
          %v505 = vadd.f32 %v504, %v481
          %v506 = vadd.f32 %v505, %v482
          %v507 = vadd.f32 %v506, %v483
          %v508 = vadd.f32 %v507, %v484
          %v509 = vadd.f32 %v508, %v485
          %v510 = vadd.f32 %v509, %v486
          %v511 = vadd.f32 %v510, %v487
          %v512 = vadd.f32 %v511, %v488
          %v513 = vadd.f32 %v512, %v489
          %v514 = vadd.f32 %v513, %v490
          %v515 = vadd.f32 %v514, %v491
          %v516 = vadd.f32 %v515, %v492
          %v517 = vadd.f32 %v516, %v493
          %v518 = vadd.f32 %v517, %v494
          %v519 = vadd.f32 %v518, %v495
          %v520 = vadd.f32 %v519, %v496
          %v521 = vadd.f32 %v520, %v497
          %v522 = vadd.f32 %v498, %v521
          %523 = vst [vmem:[#allocation7] sm:$0xff] %v522
        $region44: #{tpu_custom_call.1} parent=27 // pred_fallthru
          _
        %p524 = scmp.eq.s32.totalorder %s253, 1
        // Predicated region
        $region45: #{tpu_custom_call.1} parent=27 // pred_check
          %p525 = pneg %p524
        $region46: #{tpu_custom_call.1} parent=27 // pred_check_branch
          %527 = sbr.rel (%p525) target = $region48
        $region47: #{tpu_custom_call.1} parent=27 // pred_region
          %v528 = vld [vmem:[%s201] sm:$0xff]
          %v529 = vld [vmem:[%s201 + $0x8] sm:$0xff]
          %v530 = vld [vmem:[%s201 + $0x10] sm:$0xff]
          %v531 = vld [vmem:[%s201 + $0x18] sm:$0xff]
          %v532 = vld [vmem:[%s210] sm:$0x3]
          %v533 = vld [vmem:[%s210 + $0x2] sm:$0x3]
          %v534 = vld [vmem:[%s210 + $0x4] sm:$0x3]
          %v535 = vld [vmem:[%s210 + $0x6] sm:$0x3]
          %vm536 = vnez %v532
          %vm537 = vnez %v533
          %vm538 = vnez %v534
          %vm539 = vnez %v535
          %v540 = vlaneseq
          %v541 = vshrl.u32 %v540, 7
          %v542 = vadd.s32 %v541, 8
          %v543 = vadd.s32 %v541, 16
          %v544 = vadd.s32 %v541, 24
          %vm545 = vcmp.lt.s32.totalorder %v541, 8
          %vm546 = vcmp.lt.s32.totalorder %v542, 8
          %vm547 = vcmp.lt.s32.totalorder %v543, 8
          %vm548 = vcmp.lt.s32.totalorder %v544, 8
          %vm549 = vmpackc.low %vm545, %vm545
          %vm550 = vmpackc.even %vm549, %vm549
          %vm551 = vmpackc.low %vm546, %vm546
          %vm552 = vmpackc.even %vm551, %vm551
          %vm553 = vmpackc.low %vm547, %vm547
          %vm554 = vmpackc.even %vm553, %vm553
          %vm555 = vmpackc.low %vm548, %vm548
          %vm556 = vmpackc.even %vm555, %vm555
          %vm557 = vmand %vm536, %vm550
          %vm558 = vmand %vm537, %vm552
          %vm559 = vmand %vm538, %vm554
          %vm560 = vmand %vm539, %vm556
          %v561 = vadd.f32 %v528, 1e-07
          %v562 = vadd.f32 %v529, 1e-07
          %v563 = vadd.f32 %v530, 1e-07
          %v564 = vadd.f32 %v531, 1e-07
          %v565 = vlog2.pop %v561
          %v566 = vmul.f32 %v565, 0.6931472
          %v567 = vlog2.pop %v562
          %v568 = vmul.f32 %v567, 0.6931472
          %v569 = vlog2.pop %v563
          %v570 = vmul.f32 %v569, 0.6931472
          %v571 = vlog2.pop %v564
          %v572 = vmul.f32 %v571, 0.6931472
          %v573 = vsel %vm557, 16843009, 0
          %v574 = vsel %vm558, 16843009, 0
          %v575 = vsel %vm559, 16843009, 0
          %v576 = vsel %vm560, 16843009, 0
          %v577 = vunpack.c.0.s8 %v573
          %v578 = vunpack.c.0.s8 %v574
          %v579 = vunpack.c.0.s8 %v575
          %v580 = vunpack.c.0.s8 %v576
          %vm581 = vcmp.ne.s32.totalorder %v577, 0
          %vm582 = vcmp.ne.s32.totalorder %v578, 0
          %vm583 = vcmp.ne.s32.totalorder %v579, 0
          %vm584 = vcmp.ne.s32.totalorder %v580, 0
          %v585 = vsel %vm581, %v566, 0.0
          %v586 = vsel %vm582, %v568, 0.0
          %v587 = vsel %vm583, %v570, 0.0
          %v588 = vsel %vm584, %v572, 0.0
          %v589 = vld [vmem:[#allocation7] sm:$0xff]
          %v590 = vadd.f32 %v585, %v586
          %v591 = vadd.f32 %v590, %v587
          %v592 = vadd.f32 %v591, %v588
          %v593 = vadd.f32 %v589, %v592
          %594 = vst [vmem:[#allocation7] sm:$0xff] %v593
        $region48: #{tpu_custom_call.1} parent=27 // pred_fallthru
          _
        // Predicated region
        $region49: #{tpu_custom_call.1} parent=27 // pred_check
          %p595 = pneg %p110
        $region50: #{tpu_custom_call.1} parent=27 // pred_check_branch
          %597 = sbr.rel (%p595) target = $region52
        $region51: #{tpu_custom_call.1} parent=27 // pred_region
          %s599 = ssub.s32 128, 128
          %600 = vsyncadd [#allocation4], %s599
          %s601 = smul.addr %s24, 128
          %s602 = scalar_lea.hbm %s2, %s601
          %s604 = sshll.u32 [#allocation7], 4
          %s605 = int_to_ptr.vmem [resolvable:$true] %s604
          %607 = dma.vmem_to_hbm [thread:$0]  %s605, 128, %s602, [#allocation4]
        $region52: #{tpu_custom_call.1} parent=27 // pred_fallthru
          _
        // Predicated region
        $region53: #{tpu_custom_call.1} parent=27 // pred_check
          %p608 = pneg %p110
        $region54: #{tpu_custom_call.1} parent=27 // pred_check_branch
          %610 = sbr.rel (%p608) target = $region56
        $region55: #{tpu_custom_call.1} parent=27 // pred_region
          %611 = dma.done [#allocation4], 128
        $region56: #{tpu_custom_call.1} parent=27 // pred_fallthru
          _
      $region28: #{tpu_custom_call.1} parent=5 // pred_fallthru
        _
      %p612 = scmp.le.s32.totalorder 2, %s15
      // Predicated region
      $region57: #{tpu_custom_call.1} parent=5 // pred_check
        %p613 = pneg %p612
      $region58: #{tpu_custom_call.1} parent=5 // pred_check_branch
        %615 = sbr.rel (%p613) target = $region60
      $region59: #{tpu_custom_call.1} parent=5 // pred_region
        %s616 = ssub.s32 %s15, 2
      $region60: #{tpu_custom_call.1} parent=5 // pred_fallthru
        _
    $region6: #{tpu_custom_call.1} parent=1 // loop_footer
      %s19 = sadd.s32 1, %s15
    $region7: #{tpu_custom_call.1} parent=1 // loop_footer_branch
      %14 = sbr.rel target = $region3
    $region8: #{tpu_custom_call.1} parent=1 // loop_exit
      _
    %617 = vsyncpa [#allocation3], 1
    %s618 = scalar_lea.sflag [#allocation3], 1
    %619 = vsyncpa %s618, 1
    %620 = vsyncpa [#allocation6], 1
    %s621 = scalar_lea.sflag [#allocation6], 1
    %622 = vsyncpa %s621, 1
    %623 = vsyncpa [#allocation4], 1
    %s624 = scalar_lea.sflag [#allocation4], 1
    %625 = vsyncpa %s624, 1

</llo_original>
